<compile_context>
chip_gen: v5e
topology: v5e:2x2
jax: 0.10.0
libtpu: 0.0.40
codegen_flags: <defaults>
</compile_context>

<pallas_src>
import jax
import jax.numpy as jnp
from jax.experimental import pallas as pl
from jax.experimental.pallas import tpu as pltpu


def _agcrn_cell_kernel(
    hx_ref,     # (TB, N, H+Din)   lanes = [h (H) | x (Din)]
    adjT_ref,   # (N, N)           adj transposed on the host
    wbig_ref,   # (H+Din, 3H)      fused [z | r | update-x] right-multiply
    bbig_ref,   # (1, 3H)          fused [bz | br | bu]
    wuh_ref,    # (H, H)           update weights for the (r*h) path
    out_ref,    # (TB, N, H)
):
    TB, N, _ = hx_ref.shape
    H = out_ref.shape[-1]

    adj_t = adjT_ref[...]                                   # (N, N)

    # Per-batch graph aggregation adj^T @ [h|x], stacked along rows so the
    # fused gate matmul sees a (TB*N, H+Din) slab.
    a_list, h_list = [], []
    for b in range(TB):
        hx_b = hx_ref[b]                                    # (N, H+Din)
        a_list.append(jnp.dot(adj_t, hx_b,
                              preferred_element_type=jnp.float32))
        h_list.append(hx_b[:, :H])                          # lane offset 0
    a_hx = jnp.concatenate(a_list, axis=0)                  # (TB*N, H+Din)
    h = jnp.concatenate(h_list, axis=0)                     # (TB*N, H)

    # One fused MXU matmul for z | r | update-x-part (+ all three biases).
    g = jnp.dot(a_hx, wbig_ref[...],
                preferred_element_type=jnp.float32) + bbig_ref[...]
    z = jax.nn.sigmoid(g[:, :H])
    r = jax.nn.sigmoid(g[:, H:2 * H])
    u_x = g[:, 2 * H:]                                      # includes bu

    # Candidate state: needs adj^T @ (r*h) per batch element.
    rh = r * h                                              # (TB*N, H)
    arh_list = [
        jnp.dot(adj_t, rh[b * N:(b + 1) * N, :],
                preferred_element_type=jnp.float32)
        for b in range(TB)
    ]
    a_rh = jnp.concatenate(arh_list, axis=0)                # (TB*N, H)

    h_tilde = jnp.tanh(
        u_x + jnp.dot(a_rh, wuh_ref[...],
                      preferred_element_type=jnp.float32))

    h_new = h + z * (h_tilde - h)                           # = (1-z)*h + z*h~

    for b in range(TB):
        out_ref[b] = h_new[b * N:(b + 1) * N, :].astype(out_ref.dtype)


def _pick_tb(B, N):
    """Batch elements per grid step.

    Fill the MXU M dim (aim TB*N >= 256) while keeping >= 2 grid steps when
    the batch allows it, so v7x's two TensorCores both get work (megacore).
    """
    divisors = [d for d in range(1, B + 1) if B % d == 0]
    for d in divisors:  # smallest TB that reaches 256 rows and keeps 2 steps
        if d * N >= 256 and B // d >= 2:
            return d
    two_step = [d for d in divisors if B // d >= 2]
    if two_step:
        return max(two_step)
    return B


def agcrn_cell(x, h_prev, adj, params):
    """x: (B,N,Din), h_prev: (B,N,H), adj: (N,N) -> h: (B,N,H)."""
    B, N, Din = x.shape
    H = h_prev.shape[-1]
    F = Din + H

    wg, bg, wu, bu_ = params["wg"], params["bg"], params["wu"], params["bu"]
    # PyTorch Linear: y = in @ W^T + b, with in = concat([x, h], -1) (x first).
    # Split by output gate (z rows 0:H, r rows H:2H) and input part (x cols
    # 0:Din, h cols Din:).
    wzx, wzh = wg[:H, :Din].T, wg[:H, Din:].T               # (Din,H), (H,H)
    wrx, wrh = wg[H:, :Din].T, wg[H:, Din:].T
    wux, wuh = wu[:, :Din].T, wu[:, Din:].T

    # Kernel input is hx = [h | x]; fused weight rows follow that order.
    # Update column block has zero h-rows: the h path of the candidate goes
    # through (adj^T @ (r*h)) @ wuh instead.
    w_big = jnp.concatenate([
        jnp.concatenate([wzh, wrh, jnp.zeros((H, H), wg.dtype)], axis=1),
        jnp.concatenate([wzx, wrx, wux], axis=1),
    ], axis=0)                                              # (H+Din, 3H)
    b_big = jnp.concatenate([bg[:H], bg[H:], bu_]).reshape(1, 3 * H)

    adj_t = adj.T                                           # host-side, free
    hx = jnp.concatenate([h_prev, x], axis=-1)              # (B, N, H+Din)

    TB = _pick_tb(B, N)
    grid = (B // TB,)

    def const(shape):
        return pl.BlockSpec(shape, lambda b: (0,) * len(shape))

    return pl.pallas_call(
        _agcrn_cell_kernel,
        out_shape=jax.ShapeDtypeStruct((B, N, H), x.dtype),
        grid_spec=pltpu.PrefetchScalarGridSpec(
            num_scalar_prefetch=0,
            grid=grid,
            in_specs=[
                pl.BlockSpec((TB, N, F), lambda b: (b, 0, 0)),
                const((N, N)),
                const((F, 3 * H)),
                const((1, 3 * H)),
                const((H, H)),
            ],
            out_specs=pl.BlockSpec((TB, N, H), lambda b: (b, 0, 0)),
        ),
        compiler_params=pltpu.CompilerParams(
            dimension_semantics=("parallel",)),
    )(hx, adj_t, w_big, b_big, wuh)


def agcrn_cell_reference(x, h_prev, adj, params):
    """Pure-JAX mirror of the PyTorch forward for verification."""
    wg, bg, wu, bu_ = params["wg"], params["bg"], params["wu"], params["bu"]
    H = h_prev.shape[-1]

    def graph_conv(inp, w, b):
        g = jnp.einsum("bnf,nm->bmf", inp, adj)
        return g @ w.T + b

    xh = jnp.concatenate([x, h_prev], axis=-1)
    z_r = jax.nn.sigmoid(graph_conv(xh, wg, bg))
    z, r = z_r[..., :H], z_r[..., H:]
    h_tilde = jnp.tanh(
        graph_conv(jnp.concatenate([x, r * h_prev], axis=-1), wu, bu_))
    return (1.0 - z) * h_prev + z * h_tilde


if __name__ == "__main__":
    B, N, Din, H = 2, 16, 4, 32
    F = Din + H
    key = jax.random.PRNGKey(0)
    kx, kh, ka, k1, k2, k3, k4 = jax.random.split(key, 7)

    x = jax.random.normal(kx, (B, N, Din), dtype=jnp.float32)
    h_prev = jax.random.normal(kh, (B, N, H), dtype=jnp.float32)
    adj_raw = jax.random.uniform(ka, (N, N), dtype=jnp.float32)
    adj = jax.nn.softmax(adj_raw, axis=-1)

    bound = 1.0 / jnp.sqrt(jnp.float32(F))
    params = {
        "wg": jax.random.uniform(k1, (2 * H, F), jnp.float32, -bound, bound),
        "bg": jax.random.uniform(k2, (2 * H,), jnp.float32, -bound, bound),
        "wu": jax.random.uniform(k3, (H, F), jnp.float32, -bound, bound),
        "bu": jax.random.uniform(k4, (H,), jnp.float32, -bound, bound),
    }

    h_kernel = jax.block_until_ready(agcrn_cell(x, h_prev, adj, params))
    h_ref = jax.block_until_ready(agcrn_cell_reference(x, h_prev, adj, params))

    assert h_kernel.shape == (B, N, H)
    assert jnp.allclose(h_kernel, h_ref, atol=1e-5, rtol=1e-5)
    print("KERNEL_OK")
</pallas_src>

<mosaic_0001>
module attributes {stable_mosaic.version = 11 : i64} {
  func.func @_agcrn_cell_kernel(%arg0: i32, %arg1: memref<1x16x36xf32, #tpu.memory_space<vmem>>, %arg2: memref<16x16xf32, #tpu.memory_space<vmem>>, %arg3: memref<36x96xf32, #tpu.memory_space<vmem>>, %arg4: memref<1x96xf32, #tpu.memory_space<vmem>>, %arg5: memref<32x32xf32, #tpu.memory_space<vmem>>, %arg6: memref<1x16x32xf32, #tpu.memory_space<vmem>>) attributes {dimension_semantics = [#tpu.dimension_semantics<parallel>], iteration_bounds = array<i64: 2>, scalar_prefetch = 0 : i64, scratch_operands = 0 : i64, tpu.core_type = #tpu.core_type<tc>, window_params = [{transform_indices = @transform_0, window_bounds = array<i64: 1, 16, 36>}, {pipeline_mode = #tpu.pipeline_mode<synchronous>, transform_indices = @transform_1, window_bounds = array<i64: 16, 16>}, {pipeline_mode = #tpu.pipeline_mode<synchronous>, transform_indices = @transform_2, window_bounds = array<i64: 36, 96>}, {pipeline_mode = #tpu.pipeline_mode<synchronous>, transform_indices = @transform_3, window_bounds = array<i64: 1, 96>}, {pipeline_mode = #tpu.pipeline_mode<synchronous>, transform_indices = @transform_4, window_bounds = array<i64: 32, 32>}, {transform_indices = @transform_5, window_bounds = array<i64: 1, 16, 32>}]} {
    %c0 = arith.constant 0 : index
    %c0_0 = arith.constant 0 : index
    %0 = vector.load %arg2[%c0, %c0_0] : memref<16x16xf32, #tpu.memory_space<vmem>>, vector<16x16xf32>
    %c0_1 = arith.constant 0 : index
    %c0_2 = arith.constant 0 : index
    %c0_3 = arith.constant 0 : index
    %1 = vector.load %arg1[%c0_1, %c0_2, %c0_3] : memref<1x16x36xf32, #tpu.memory_space<vmem>>, vector<1x16x36xf32>
    %2 = vector.shape_cast %1 : vector<1x16x36xf32> to vector<16x36xf32>
    %cst = arith.constant dense<0.000000e+00> : vector<16x36xf32>
    %3 = tpu.matmul %0, %2, %cst {dimension_numbers = #tpu.dot_dimension_numbers<[1], [0], [0], [1], [0, 0, 1, 1], [], []>} : vector<16x16xf32>, vector<16x36xf32>, vector<16x36xf32> -> vector<16x36xf32>
    %4 = vector.extract_strided_slice %2 {offsets = [0, 0], sizes = [16, 32], strides = [1, 1]} : vector<16x36xf32> to vector<16x32xf32>
    %c0_4 = arith.constant 0 : index
    %c0_5 = arith.constant 0 : index
    %5 = vector.load %arg3[%c0_4, %c0_5] : memref<36x96xf32, #tpu.memory_space<vmem>>, vector<36x96xf32>
    %cst_6 = arith.constant dense<0.000000e+00> : vector<16x96xf32>
    %6 = tpu.matmul %3, %5, %cst_6 {dimension_numbers = #tpu.dot_dimension_numbers<[1], [0], [0], [1], [0, 0, 1, 1], [], []>} : vector<16x36xf32>, vector<36x96xf32>, vector<16x96xf32> -> vector<16x96xf32>
    %c0_7 = arith.constant 0 : index
    %c0_8 = arith.constant 0 : index
    %7 = vector.load %arg4[%c0_7, %c0_8] : memref<1x96xf32, #tpu.memory_space<vmem>>, vector<1x96xf32>
    %8 = vector.broadcast %7 : vector<1x96xf32> to vector<16x96xf32>
    %9 = arith.addf %6, %8 : vector<16x96xf32>
    %10 = vector.extract_strided_slice %9 {offsets = [0, 0], sizes = [16, 32], strides = [1, 1]} : vector<16x96xf32> to vector<16x32xf32>
    %11 = arith.negf %10 : vector<16x32xf32>
    %12 = math.exp %11 : vector<16x32xf32>
    %cst_9 = arith.constant 1.000000e+00 : f32
    %13 = vector.broadcast %cst_9 : f32 to vector<16x32xf32>
    %14 = arith.addf %13, %12 : vector<16x32xf32>
    %15 = arith.divf %13, %14 : vector<16x32xf32>
    %16 = vector.extract_strided_slice %9 {offsets = [0, 32], sizes = [16, 32], strides = [1, 1]} : vector<16x96xf32> to vector<16x32xf32>
    %17 = arith.negf %16 : vector<16x32xf32>
    %18 = math.exp %17 : vector<16x32xf32>
    %cst_10 = arith.constant 1.000000e+00 : f32
    %19 = vector.broadcast %cst_10 : f32 to vector<16x32xf32>
    %20 = arith.addf %19, %18 : vector<16x32xf32>
    %21 = arith.divf %19, %20 : vector<16x32xf32>
    %22 = vector.extract_strided_slice %9 {offsets = [0, 64], sizes = [16, 32], strides = [1, 1]} : vector<16x96xf32> to vector<16x32xf32>
    %23 = arith.mulf %21, %4 : vector<16x32xf32>
    %cst_11 = arith.constant dense<0.000000e+00> : vector<16x32xf32>
    %24 = tpu.matmul %0, %23, %cst_11 {dimension_numbers = #tpu.dot_dimension_numbers<[1], [0], [0], [1], [0, 0, 1, 1], [], []>} : vector<16x16xf32>, vector<16x32xf32>, vector<16x32xf32> -> vector<16x32xf32>
    %c0_12 = arith.constant 0 : index
    %c0_13 = arith.constant 0 : index
    %25 = vector.load %arg5[%c0_12, %c0_13] : memref<32x32xf32, #tpu.memory_space<vmem>>, vector<32x32xf32>
    %cst_14 = arith.constant dense<0.000000e+00> : vector<16x32xf32>
    %26 = tpu.matmul %24, %25, %cst_14 {dimension_numbers = #tpu.dot_dimension_numbers<[1], [0], [0], [1], [0, 0, 1, 1], [], []>} : vector<16x32xf32>, vector<32x32xf32>, vector<16x32xf32> -> vector<16x32xf32>
    %27 = arith.addf %22, %26 : vector<16x32xf32>
    %28 = math.tanh %27 : vector<16x32xf32>
    %29 = arith.subf %28, %4 : vector<16x32xf32>
    %30 = arith.mulf %15, %29 : vector<16x32xf32>
    %31 = arith.addf %4, %30 : vector<16x32xf32>
    %c0_15 = arith.constant 0 : index
    %c0_16 = arith.constant 0 : index
    %c0_17 = arith.constant 0 : index
    %32 = vector.load %arg6[%c0_15, %c0_16, %c0_17] : memref<1x16x32xf32, #tpu.memory_space<vmem>>, vector<1x16x32xf32>
    %33 = vector.shape_cast %32 : vector<1x16x32xf32> to vector<16x32xf32>
    %34 = vector.shape_cast %31 : vector<16x32xf32> to vector<1x16x32xf32>
    tpu.vector_store %arg6[%c0_15, %c0_16, %c0_17], %34 {strides = array<i32>} : memref<1x16x32xf32, #tpu.memory_space<vmem>>, vector<1x16x32xf32>,
    return
  }
  func.func @transform_0(%arg0: i32) -> (i32, i32, i32) {
    %c0_i32 = arith.constant 0 : i32
    %c0_i32_0 = arith.constant 0 : i32
    %c0_i32_1 = arith.constant 0 : i32
    return %arg0, %c0_i32, %c0_i32_0 : i32, i32, i32
  }
  func.func @transform_1(%arg0: i32) -> (i32, i32) {
    %c0_i32 = arith.constant 0 : i32
    %c0_i32_0 = arith.constant 0 : i32
    %c0_i32_1 = arith.constant 0 : i32
    return %c0_i32, %c0_i32_0 : i32, i32
  }
  func.func @transform_2(%arg0: i32) -> (i32, i32) {
    %c0_i32 = arith.constant 0 : i32
    %c0_i32_0 = arith.constant 0 : i32
    %c0_i32_1 = arith.constant 0 : i32
    return %c0_i32, %c0_i32_0 : i32, i32
  }
  func.func @transform_3(%arg0: i32) -> (i32, i32) {
    %c0_i32 = arith.constant 0 : i32
    %c0_i32_0 = arith.constant 0 : i32
    %c0_i32_1 = arith.constant 0 : i32
    return %c0_i32, %c0_i32_0 : i32, i32
  }
  func.func @transform_4(%arg0: i32) -> (i32, i32) {
    %c0_i32 = arith.constant 0 : i32
    %c0_i32_0 = arith.constant 0 : i32
    %c0_i32_1 = arith.constant 0 : i32
    return %c0_i32, %c0_i32_0 : i32, i32
  }
  func.func @transform_5(%arg0: i32) -> (i32, i32, i32) {
    %c0_i32 = arith.constant 0 : i32
    %c0_i32_0 = arith.constant 0 : i32
    %c0_i32_1 = arith.constant 0 : i32
    return %arg0, %c0_i32, %c0_i32_0 : i32, i32, i32
  }
}

</mosaic_0001>

<llo_original>
// kernel: tpu_custom_call.1
$region0: #{tpu_custom_call.1}
  #allocation0 [shape = 'u32[]', space=smem, size = 0x4, offset = 0x4, fixed_abs, tag = 'smem constant byte address 0x4 - core index']
  #allocation1 [shape = 'u32[72,128]{1,0:T(1,128)}', space=vmem, size = 0x9000, scoped, tag = 'internal scratch']
  %s0 = inlined_call_operand.hbm [shape: f32[2,16,36], index: 0, kind: input, shape index: {}]
  %s1 = inlined_call_operand.hbm [shape: f32[16,16], index: 1, kind: input, shape index: {}]
  %s2 = inlined_call_operand.hbm [shape: f32[36,96], index: 2, kind: input, shape index: {}]
  %s3 = inlined_call_operand.vmem [shape: f32[1,96], index: 3, kind: input, shape index: {}]
  %s4 = inlined_call_operand.hbm [shape: f32[32,32], index: 4, kind: input, shape index: {}]
  %s5 = inlined_call_operand.hbm [shape: f32[2,16,32], index: 5, kind: output, shape index: {}]
  %s6 = sld [smem:[#allocation0]]
  $region69: #{tpu_custom_call.1} parent=0
    _
  %s8 = ssub.s32 1, %s6
  %s9 = scalar_select 0, %s8, %s6
  $region1: #{tpu_custom_call.1} parent=0
    #allocation2 [shape = 'u8[16384]{0}', space=vmem, size = 0x4000, scoped, tag = 'input window, operand 0']
    #allocation3 [shape = 's32[2]{0}', space=sflag, size = 0x8, scoped, tag = 'scoped memory for tpu_custom_call.1']
    #allocation4 [shape = 's32[2]{0}', space=sflag, size = 0x8, scoped, tag = 'scoped memory for tpu_custom_call.1']
    #allocation5 [shape = 'u8[8192]{0}', space=vmem, size = 0x2000, scoped, tag = 'input window, operand 1, single buffered']
    #allocation6 [shape = 's32[1]{0}', space=sflag, size = 0x4, scoped, tag = 'scoped memory for tpu_custom_call.1']
    #allocation7 [shape = 'u8[20480]{0}', space=vmem, size = 0x5000, scoped, tag = 'input window, operand 2, single buffered']
    #allocation8 [shape = 'u8[16384]{0}', space=vmem, size = 0x4000, scoped, tag = 'input window, operand 4, single buffered']
    #allocation9 [shape = 's32[1]{0}', space=sflag, size = 0x4, scoped, tag = 'scoped memory for tpu_custom_call.1']
    #allocation10 [shape = 'u8[16384]{0}', space=vmem, size = 0x4000, scoped, tag = 'output window, operand 0']
    %10 = vsyncpa [#allocation3], 0
    %s11 = scalar_lea.sflag [#allocation3], 1
    %12 = vsyncpa %s11, 0
    %13 = vsyncpa [#allocation6], 0
    %14 = vsyncpa [#allocation9], 0
    %15 = vsyncpa [#allocation4], 0
    %s16 = scalar_lea.sflag [#allocation4], 1
    %17 = vsyncpa %s16, 0
    loop: start=0, step=1, limit=4
    $region2: #{tpu_custom_call.1} parent=1 // loop_pre_header
      _
    $region3: #{tpu_custom_call.1} parent=1 // loop_header
      %s19 = sphi 0, %s23
      %p20 = scmp.ge.s32.totalorder %s19, 4
      %s29 = sphi 0, %s31
      %s32 = sphi 0, %s29
      %s33 = sphi 0, %s32
      %s49 = sphi 0, %s33
      %s53 = sphi 0, %s53
      %s55 = sphi 0, %s53
      %s56 = sphi 0, %s55
      %s70 = sphi 0, %s56
      %s74 = sphi 0, %s74
      %s76 = sphi 0, %s74
      %s77 = sphi 0, %s76
      %s91 = sphi 0, %s77
      %s95 = sphi 0, %s95
      %s97 = sphi 0, %s95
      %s98 = sphi 0, %s97
      %s112 = sphi 0, %s98
      %s116 = sphi 0, %s116
      %s118 = sphi 0, %s116
      %s119 = sphi 0, %s118
      %s133 = sphi 0, %s119
      %s139 = sphi 0, %s141
      %s142 = sphi 0, %s139
      %s143 = sphi 0, %s142
      %s159 = sphi 0, %s143
    $region4: #{tpu_custom_call.1} parent=1 // loop_header_branch
      %22 = sbr.rel (%p20) target = $region8
    $region5: #{tpu_custom_call.1} parent=1 // loop_body
      %s24 = ssub.s32 %s19, 1
      %s25 = ssub.s32 %s19, 2
      %s26 = sadd.s32 %s19, 1
      %s27 = ssub.s32 %s19, %s26
      %p28 = scmp.eq.s32.totalorder %s27, 0
      %s30 = sadd.s32 %s29, 1
      %s31 = scalar_select %p28, %s29, %s30
      %p34 = pneg %p28
      %p35 = scmp.eq.s32.totalorder %s19, 1
      %p36 = por %p34, %p35
      %p37 = scmp.ne.s32.totalorder %s29, %s32
      %p38 = scmp.eq.s32.totalorder %s19, 0
      %p39 = por %p37, %p38
      %p40 = scmp.ne.s32.totalorder %s29, %s32
      %p41 = scmp.eq.s32.totalorder %s24, 1
      %p42 = por %p40, %p41
      %p43 = scmp.ne.s32.totalorder %s32, %s33
      %p44 = scmp.eq.s32.totalorder %s24, 0
      %p45 = por %p43, %p44
      %p46 = scmp.ne.s32.totalorder %s32, %s33
      %p47 = scmp.eq.s32.totalorder %s25, 1
      %p48 = por %p46, %p47
      %p50 = scmp.ne.s32.totalorder %s33, %s49
      %p51 = scmp.eq.s32.totalorder %s25, 0
      %p52 = por %p50, %p51
      %s54 = sadd.s32 %s53, 1
      %p57 = scmp.eq.s32.totalorder %s19, 1
      %p58 = scmp.ne.s32.totalorder %s53, %s55
      %p59 = scmp.eq.s32.totalorder %s19, 0
      %p60 = por %p58, %p59
      %p61 = scmp.ne.s32.totalorder %s53, %s55
      %p62 = scmp.eq.s32.totalorder %s24, 1
      %p63 = por %p61, %p62
      %p64 = scmp.ne.s32.totalorder %s55, %s56
      %p65 = scmp.eq.s32.totalorder %s24, 0
      %p66 = por %p64, %p65
      %p67 = scmp.ne.s32.totalorder %s55, %s56
      %p68 = scmp.eq.s32.totalorder %s25, 1
      %p69 = por %p67, %p68
      %p71 = scmp.ne.s32.totalorder %s56, %s70
      %p72 = scmp.eq.s32.totalorder %s25, 0
      %p73 = por %p71, %p72
      %s75 = sadd.s32 %s74, 1
      %p78 = scmp.eq.s32.totalorder %s19, 1
      %p79 = scmp.ne.s32.totalorder %s74, %s76
      %p80 = scmp.eq.s32.totalorder %s19, 0
      %p81 = por %p79, %p80
      %p82 = scmp.ne.s32.totalorder %s74, %s76
      %p83 = scmp.eq.s32.totalorder %s24, 1
      %p84 = por %p82, %p83
      %p85 = scmp.ne.s32.totalorder %s76, %s77
      %p86 = scmp.eq.s32.totalorder %s24, 0
      %p87 = por %p85, %p86
      %p88 = scmp.ne.s32.totalorder %s76, %s77
      %p89 = scmp.eq.s32.totalorder %s25, 1
      %p90 = por %p88, %p89
      %p92 = scmp.ne.s32.totalorder %s77, %s91
      %p93 = scmp.eq.s32.totalorder %s25, 0
      %p94 = por %p92, %p93
      %s96 = sadd.s32 %s95, 1
      %p99 = scmp.eq.s32.totalorder %s19, 1
      %p100 = scmp.ne.s32.totalorder %s95, %s97
      %p101 = scmp.eq.s32.totalorder %s19, 0
      %p102 = por %p100, %p101
      %p103 = scmp.ne.s32.totalorder %s95, %s97
      %p104 = scmp.eq.s32.totalorder %s24, 1
      %p105 = por %p103, %p104
      %p106 = scmp.ne.s32.totalorder %s97, %s98
      %p107 = scmp.eq.s32.totalorder %s24, 0
      %p108 = por %p106, %p107
      %p109 = scmp.ne.s32.totalorder %s97, %s98
      %p110 = scmp.eq.s32.totalorder %s25, 1
      %p111 = por %p109, %p110
      %p113 = scmp.ne.s32.totalorder %s98, %s112
      %p114 = scmp.eq.s32.totalorder %s25, 0
      %p115 = por %p113, %p114
      %s117 = sadd.s32 %s116, 1
      %p120 = scmp.eq.s32.totalorder %s19, 1
      %p121 = scmp.ne.s32.totalorder %s116, %s118
      %p122 = scmp.eq.s32.totalorder %s19, 0
      %p123 = por %p121, %p122
      %p124 = scmp.ne.s32.totalorder %s116, %s118
      %p125 = scmp.eq.s32.totalorder %s24, 1
      %p126 = por %p124, %p125
      %p127 = scmp.ne.s32.totalorder %s118, %s119
      %p128 = scmp.eq.s32.totalorder %s24, 0
      %p129 = por %p127, %p128
      %p130 = scmp.ne.s32.totalorder %s118, %s119
      %p131 = scmp.eq.s32.totalorder %s25, 1
      %p132 = por %p130, %p131
      %p134 = scmp.ne.s32.totalorder %s119, %s133
      %p135 = scmp.eq.s32.totalorder %s25, 0
      %p136 = por %p134, %p135
      %s137 = ssub.s32 %s19, %s26
      %p138 = scmp.eq.s32.totalorder %s137, 0
      %s140 = sadd.s32 %s139, 1
      %s141 = scalar_select %p138, %s139, %s140
      %p144 = pneg %p138
      %p145 = scmp.eq.s32.totalorder %s19, 1
      %p146 = por %p144, %p145
      %p147 = scmp.ne.s32.totalorder %s139, %s142
      %p148 = scmp.eq.s32.totalorder %s19, 0
      %p149 = por %p147, %p148
      %p150 = scmp.ne.s32.totalorder %s139, %s142
      %p151 = scmp.eq.s32.totalorder %s24, 1
      %p152 = por %p150, %p151
      %p153 = scmp.ne.s32.totalorder %s142, %s143
      %p154 = scmp.eq.s32.totalorder %s24, 0
      %p155 = por %p153, %p154
      %p156 = scmp.ne.s32.totalorder %s142, %s143
      %p157 = scmp.eq.s32.totalorder %s25, 1
      %p158 = por %p156, %p157
      %p160 = scmp.ne.s32.totalorder %s143, %s159
      %p161 = scmp.eq.s32.totalorder %s25, 0
      %p162 = por %p160, %p161
      %p163 = scmp.le.s32.totalorder 1, %s19
      %p164 = scmp.lt.s32.totalorder %s19, 3
      %p165 = pnand %p163, %p164
      %p166 = pneg %p165
      // Predicated region
      $region9: #{tpu_custom_call.1} parent=5 // pred_check
        _
      $region10: #{tpu_custom_call.1} parent=5 // pred_check_branch
        %168 = sbr.rel (%p165) target = $region12
      $region11: #{tpu_custom_call.1} parent=5 // pred_region
        %s169 = ssub.s32 %s19, 1
        // Predicated region
        $region13: #{tpu_custom_call.1} parent=11 // pred_check
          %p170 = pneg %p66
        $region14: #{tpu_custom_call.1} parent=11 // pred_check_branch
          %172 = sbr.rel (%p170) target = $region16
        $region15: #{tpu_custom_call.1} parent=11 // pred_region
          %174 = vsyncadd [#allocation6], 0
          %s175 = sshll.u32 %s1, 4
          %s176 = int_to_ptr.hbm [resolvable:$true] %s175
          %s177 = sshll.u32 [#allocation5], 4
          %s178 = int_to_ptr.vmem [resolvable:$true] %s177
          %183 = dma.hbm_to_vmem [thread:$0]  %s176, 256, %s178, [#allocation6], 128, 128, 8
        $region16: #{tpu_custom_call.1} parent=11 // pred_fallthru
          _
        // Predicated region
        $region17: #{tpu_custom_call.1} parent=11 // pred_check
          %p184 = pneg %p87
        $region18: #{tpu_custom_call.1} parent=11 // pred_check_branch
          %186 = sbr.rel (%p184) target = $region20
        $region19: #{tpu_custom_call.1} parent=11 // pred_region
          %188 = vsyncadd [#allocation6], 0
          %s189 = sshll.u32 %s2, 4
          %s190 = int_to_ptr.hbm [resolvable:$true] %s189
          %s191 = sshll.u32 [#allocation7], 4
          %s192 = int_to_ptr.vmem [resolvable:$true] %s191
          %197 = dma.hbm_to_vmem [thread:$0]  %s190, 640, %s192, [#allocation6], 128, 128, 8
        $region20: #{tpu_custom_call.1} parent=11 // pred_fallthru
          _
        // Predicated region
        $region21: #{tpu_custom_call.1} parent=11 // pred_check
          %p198 = pneg %p108
        $region22: #{tpu_custom_call.1} parent=11 // pred_check_branch
          %200 = sbr.rel (%p198) target = $region24
        $region23: #{tpu_custom_call.1} parent=11 // pred_region
          _
        $region24: #{tpu_custom_call.1} parent=11 // pred_fallthru
          _
        // Predicated region
        $region25: #{tpu_custom_call.1} parent=11 // pred_check
          %p201 = pneg %p129
        $region26: #{tpu_custom_call.1} parent=11 // pred_check_branch
          %203 = sbr.rel (%p201) target = $region28
        $region27: #{tpu_custom_call.1} parent=11 // pred_region
          %205 = vsyncadd [#allocation9], 0
          %s206 = sshll.u32 %s4, 4
          %s207 = int_to_ptr.hbm [resolvable:$true] %s206
          %s208 = sshll.u32 [#allocation8], 4
          %s209 = int_to_ptr.vmem [resolvable:$true] %s208
          %214 = dma.hbm_to_vmem [thread:$0]  %s207, 512, %s209, [#allocation9], 128, 128, 8
        $region28: #{tpu_custom_call.1} parent=11 // pred_fallthru
          _
      $region12: #{tpu_custom_call.1} parent=5 // pred_fallthru
        _
      %p215 = scmp.lt.s32.totalorder %s19, 2
      // Predicated region
      $region29: #{tpu_custom_call.1} parent=5 // pred_check
        %p216 = pneg %p215
      $region30: #{tpu_custom_call.1} parent=5 // pred_check_branch
        %218 = sbr.rel (%p216) target = $region32
      $region31: #{tpu_custom_call.1} parent=5 // pred_region
        // Predicated region
        $region33: #{tpu_custom_call.1} parent=31 // pred_check
          %p219 = pneg %p39
        $region34: #{tpu_custom_call.1} parent=31 // pred_check_branch
          %221 = sbr.rel (%p219) target = $region36
        $region35: #{tpu_custom_call.1} parent=31 // pred_region
          %s222 = sand.u32 %s29, 1
          %s223 = scalar_lea.sflag [#allocation3], %s222
          %s224 = sand.u32 %s29, 1
          %s225 = smul.addr %s224, 16
          %s226 = scalar_lea.vmem [#allocation2], %s225
          %228 = vsyncadd %s223, 0
          %s229 = smul.addr %s19, 2
          %s230 = smul.addr %s229, 8
          %s231 = scalar_lea.hbm %s0, %s230
          %s232 = sshll.u32 %s231, 4
          %s233 = int_to_ptr.hbm [resolvable:$true] %s232
          %s234 = sshll.u32 %s226, 4
          %s235 = int_to_ptr.vmem [resolvable:$true] %s234
          %240 = dma.hbm_to_vmem [thread:$0]  %s233, 256, %s235, %s223, 128, 128, 8
        $region36: #{tpu_custom_call.1} parent=31 // pred_fallthru
          _
      $region32: #{tpu_custom_call.1} parent=5 // pred_fallthru
        _
      %p241 = scmp.le.s32.totalorder 1, %s19
      %p242 = scmp.lt.s32.totalorder %s19, 3
      %p243 = pnand %p241, %p242
      %p244 = pneg %p243
      // Predicated region
      $region37: #{tpu_custom_call.1} parent=5 // pred_check
        _
      $region38: #{tpu_custom_call.1} parent=5 // pred_check_branch
        %246 = sbr.rel (%p243) target = $region40
      $region39: #{tpu_custom_call.1} parent=5 // pred_region
        %s247 = ssub.s32 %s19, 1
        %s248 = sand.u32 %s32, 1
        %s249 = scalar_lea.sflag [#allocation3], %s248
        %s250 = sand.u32 %s32, 1
        %s251 = smul.addr %s250, 16
        %s252 = scalar_lea.vmem [#allocation2], %s251
        // Predicated region
        $region41: #{tpu_custom_call.1} parent=39 // pred_check
          %p253 = pneg %p45
        $region42: #{tpu_custom_call.1} parent=39 // pred_check_branch
          %255 = sbr.rel (%p253) target = $region44
        $region43: #{tpu_custom_call.1} parent=39 // pred_region
          %257 = dma.done %s249, 256
        $region44: #{tpu_custom_call.1} parent=39 // pred_fallthru
          _
        // Predicated region
        $region45: #{tpu_custom_call.1} parent=39 // pred_check
          %p258 = pneg %p66
        $region46: #{tpu_custom_call.1} parent=39 // pred_check_branch
          %260 = sbr.rel (%p258) target = $region48
        $region47: #{tpu_custom_call.1} parent=39 // pred_region
          %262 = dma.done [#allocation6], 256
        $region48: #{tpu_custom_call.1} parent=39 // pred_fallthru
          _
        // Predicated region
        $region49: #{tpu_custom_call.1} parent=39 // pred_check
          %p263 = pneg %p87
        $region50: #{tpu_custom_call.1} parent=39 // pred_check_branch
          %265 = sbr.rel (%p263) target = $region52
        $region51: #{tpu_custom_call.1} parent=39 // pred_region
          %267 = dma.done [#allocation6], 640
        $region52: #{tpu_custom_call.1} parent=39 // pred_fallthru
          _
        // Predicated region
        $region53: #{tpu_custom_call.1} parent=39 // pred_check
          %p268 = pneg %p129
        $region54: #{tpu_custom_call.1} parent=39 // pred_check_branch
          %270 = sbr.rel (%p268) target = $region56
        $region55: #{tpu_custom_call.1} parent=39 // pred_region
          %272 = dma.done [#allocation9], 512
        $region56: #{tpu_custom_call.1} parent=39 // pred_fallthru
          _
        %s273 = sand.u32 %s32, 1
        %s274 = scalar_lea.sflag [#allocation3], %s273
        %s275 = sand.u32 %s32, 1
        %s276 = smul.addr %s275, 16
        %s277 = scalar_lea.vmem [#allocation2], %s276
        %p278 = pneg %p45
        %p279 = pneg %p42
        %p280 = pneg %p66
        %p281 = pneg %p63
        %p282 = pneg %p87
        %p283 = pneg %p84
        %p284 = pneg %p108
        %p285 = pneg %p105
        %p286 = pneg %p129
        %p287 = pneg %p126
        %p288 = pneg %p155
        %p289 = pneg %p152
        %s290 = sand.u32 %s142, 1
        %s291 = scalar_lea.sflag [#allocation4], %s290
        %s292 = sand.u32 %s142, 1
        %s293 = smul.addr %s292, 16
        %s294 = scalar_lea.vmem [#allocation10], %s293
        %v295 = vld [vmem:[#allocation5] sm:$0xff]
        %v296 = vld [vmem:[#allocation5 + $0x8] sm:$0xff]
        %v297 = vld [vmem:[%s252] sm:$0xff]
        %v298 = vld [vmem:[%s252 + $0x8] sm:$0xff]
        %vm299 = vcmask 130048
        %v301 = vsel %vm299, %v295, 0
        %v304 = vsel %vm299, %v296, 0
        %306 = vmatpush.msra.mxu0 0.0
        %307 = vmatpush.msra.mxu0 0.0
        %308 = vmatpush.msra.mxu0 0.0
        %309 = vmatpush.msra.mxu0 0.0
        %310 = vmatpush.msra.mxu0 0.0
        %311 = vmatpush.msra.mxu0 0.0
        %312 = vmatpush.msra.mxu0 0.0
        %313 = vmatpush.msra.mxu0 0.0
        %314 = vmatpush.msra.mxu0 0.0
        %315 = vmatpush.msra.mxu0 0.0
        %316 = vmatpush.msra.mxu0 0.0
        %317 = vmatpush.msra.mxu0 0.0
        %318 = vmatpush.msra.mxu0 0.0
        %319 = vmatpush.msra.mxu0 0.0
        %320 = vmatpush.msra.mxu0 %v298
        %321 = vmatpush.msra.mxu0 %v297
        %322 = vmatmul.f32.gmra.mxu0 %v301
        %v323 = vpop.f32.mrf.mxu0
        %v324 = vadd.f32 0.0, %v323
        %325 = vmatmul.f32.gmra.mxu0 %v304
        %v326 = vpop.f32.mrf.mxu0
        %v327 = vadd.f32 0.0, %v326
        %328 = vdwg.mxu0
        %v329 = vld [vmem:[#allocation7] sm:$0xff]
        %v330 = vld [vmem:[#allocation7 + $0x8] sm:$0xff]
        %v331 = vld [vmem:[#allocation7 + $0x10] sm:$0xff]
        %v332 = vld [vmem:[#allocation7 + $0x18] sm:$0xff]
        %v333 = vld [vmem:[#allocation7 + $0x20] sm:$0xf]
        %v334 = vld [vmem:[%s3] sm:$0x1]
        %v336 = vperm.slane %v334, 0
        %vm338 = vcmask 293888
        %v340 = vsel %vm338, %v324, 0
        %v343 = vsel %vm338, %v327, 0
        %vm345 = vcmask 1043456
        %v347 = vsel %vm345, %v333, 0
        %349 = vmatpush.msra.mxu0 0.0
        %350 = vmatpush.msra.mxu0 0.0
        %351 = vmatpush.msra.mxu0 0.0
        %352 = vmatpush.msra.mxu0 0.0
        %353 = vmatpush.msra.mxu0 0.0
        %354 = vmatpush.msra.mxu0 0.0
        %355 = vmatpush.msra.mxu0 0.0
        %356 = vmatpush.msra.mxu0 0.0
        %357 = vmatpush.msra.mxu0 0.0
        %358 = vmatpush.msra.mxu0 0.0
        %359 = vmatpush.msra.mxu0 0.0
        %360 = vmatpush.msra.mxu0 %v347
        %361 = vmatpush.msra.mxu0 %v332
        %362 = vmatpush.msra.mxu0 %v331
        %363 = vmatpush.msra.mxu0 %v330
        %364 = vmatpush.msra.mxu0 %v329
        %365 = vmatmul.f32.gmra.mxu0 %v340
        %v366 = vpop.f32.mrf.mxu0
        %v367 = vadd.f32 %v336, %v366
        %368 = vmatmul.f32.gmra.mxu0 %v343
        %v369 = vpop.f32.mrf.mxu0
        %v370 = vadd.f32 %v336, %v369
        %371 = vdwg.mxu0
        %v372 = vxor.u32 %v367, 2147483648
        %v373 = vxor.u32 %v370, 2147483648
        %v374 = vmul.f32 %v372, 1.442695
        %v375 = vpow.pop %v374
        %v376 = vmul.f32 %v373, 1.442695
        %v377 = vpow.pop %v376
        %v378 = vadd.f32 %v375, 1.0
        %v379 = vadd.f32 %v377, 1.0
        %v380 = vrcp.pop %v378
        %v381 = vmul.f32 %v378, %v380
        %v382 = vsub.f32 1.0, %v381
        %v383 = vmul.f32 %v380, %v382
        %v384 = vadd.f32 %v380, %v383
        %vm385 = vweird.f32 %v378
        %vm386 = vweird.f32 %v380
        %vm387 = vmor %vm385, %vm386
        %v388 = vsel %vm387, %v380, %v384
        %v389 = vand.u32 2147483647, %v378
        %vm390 = vcmp.eq.f32.partialorder %v389, 8.507059e+37
        %v391 = vand.u32 %v378, 2147483648
        %v392 = vor.u32 1.1754944e-38, %v391
        %v393 = vsel %vm390, %v392, %v388
        %v394 = vmul.f32 1.0, %v393
        %v395 = vrcp.pop %v379
        %v396 = vmul.f32 %v379, %v395
        %v397 = vsub.f32 1.0, %v396
        %v398 = vmul.f32 %v395, %v397
        %v399 = vadd.f32 %v395, %v398
        %vm400 = vweird.f32 %v379
        %vm401 = vweird.f32 %v395
        %vm402 = vmor %vm400, %vm401
        %v403 = vsel %vm402, %v395, %v399
        %v404 = vand.u32 2147483647, %v379
        %vm405 = vcmp.eq.f32.partialorder %v404, 8.507059e+37
        %v406 = vand.u32 %v379, 2147483648
        %v407 = vor.u32 1.1754944e-38, %v406
        %v408 = vsel %vm405, %v407, %v403
        %v409 = vmul.f32 1.0, %v408
        %412 = vrot.lane.b32.xlu0 %v297, 32
        %v413 = vpop.permute.xlu0 %412
        %414 = vrot.lane.b32.xlu0 %v298, 32
        %v415 = vpop.permute.xlu0 %414
        %v418 = vmul.f32 %v394, %v413
        %v419 = vmul.f32 %v409, %v415
        %422 = vrot.lane.b32.xlu0 %v418, 96
        %v423 = vpop.permute.xlu0 %422
        %424 = vrot.lane.b32.xlu0 %v419, 96
        %v425 = vpop.permute.xlu0 %424
        %428 = vmatpush.msra.mxu0 0.0
        %429 = vmatpush.msra.mxu0 0.0
        %430 = vmatpush.msra.mxu0 0.0
        %431 = vmatpush.msra.mxu0 0.0
        %432 = vmatpush.msra.mxu0 0.0
        %433 = vmatpush.msra.mxu0 0.0
        %434 = vmatpush.msra.mxu0 0.0
        %435 = vmatpush.msra.mxu0 0.0
        %436 = vmatpush.msra.mxu0 0.0
        %437 = vmatpush.msra.mxu0 0.0
        %438 = vmatpush.msra.mxu0 0.0
        %439 = vmatpush.msra.mxu0 0.0
        %440 = vmatpush.msra.mxu0 0.0
        %441 = vmatpush.msra.mxu0 0.0
        %442 = vmatpush.msra.mxu0 %v425
        %443 = vmatpush.msra.mxu0 %v423
        %444 = vmatmul.f32.gmra.mxu0 %v301
        %v445 = vpop.f32.mrf.mxu0
        %v446 = vadd.f32 0.0, %v445
        %447 = vmatmul.f32.gmra.mxu0 %v304
        %v448 = vpop.f32.mrf.mxu0
        %v449 = vadd.f32 0.0, %v448
        %450 = vdwg.mxu0
        %v451 = vld [vmem:[#allocation8] sm:$0xff]
        %v452 = vld [vmem:[#allocation8 + $0x8] sm:$0xff]
        %v453 = vld [vmem:[#allocation8 + $0x10] sm:$0xff]
        %v454 = vld [vmem:[#allocation8 + $0x18] sm:$0xff]
        %vm455 = vcmask 261120
        %v457 = vsel %vm455, %v446, 0
        %v460 = vsel %vm455, %v449, 0
        %462 = vmatpush.msra.mxu0 0.0
        %463 = vmatpush.msra.mxu0 0.0
        %464 = vmatpush.msra.mxu0 0.0
        %465 = vmatpush.msra.mxu0 0.0
        %466 = vmatpush.msra.mxu0 0.0
        %467 = vmatpush.msra.mxu0 0.0
        %468 = vmatpush.msra.mxu0 0.0
        %469 = vmatpush.msra.mxu0 0.0
        %470 = vmatpush.msra.mxu0 0.0
        %471 = vmatpush.msra.mxu0 0.0
        %472 = vmatpush.msra.mxu0 0.0
        %473 = vmatpush.msra.mxu0 0.0
        %474 = vmatpush.msra.mxu0 %v454
        %475 = vmatpush.msra.mxu0 %v453
        %476 = vmatpush.msra.mxu0 %v452
        %477 = vmatpush.msra.mxu0 %v451
        %478 = vmatmul.f32.gmra.mxu0 %v457
        %v479 = vpop.f32.mrf.mxu0
        %v480 = vadd.f32 0.0, %v479
        %481 = vmatmul.f32.gmra.mxu0 %v460
        %v482 = vpop.f32.mrf.mxu0
        %v483 = vadd.f32 0.0, %v482
        %484 = vdwg.mxu0
        %487 = vrot.lane.b32.xlu0 %v480, 64
        %v488 = vpop.permute.xlu0 %487
        %489 = vrot.lane.b32.xlu0 %v483, 64
        %v490 = vpop.permute.xlu0 %489
        %v493 = vadd.f32 %v367, %v488
        %v494 = vadd.f32 %v370, %v490
        %v495 = vtanh.pop %v493
        %v496 = vtanh.pop %v494
        %497 = vrot.lane.b32.xlu0 %v297, 64
        %v498 = vpop.permute.xlu0 %497
        %499 = vrot.lane.b32.xlu0 %v298, 64
        %v500 = vpop.permute.xlu0 %499
        %v503 = vsub.f32 %v495, %v498
        %v504 = vsub.f32 %v496, %v500
        %507 = vrot.lane.b32.xlu0 %v503, 64
        %v508 = vpop.permute.xlu0 %507
        %509 = vrot.lane.b32.xlu0 %v504, 64
        %v510 = vpop.permute.xlu0 %509
        %v513 = vmul.f32 %v394, %v508
        %v514 = vmul.f32 %v409, %v510
        %v515 = vadd.f32 %v297, %v513
        %v516 = vadd.f32 %v298, %v514
        %517 = vst.msk [vmem:[%s294] sm:$0xff] %vm455, %v515
        %518 = vst.msk [vmem:[%s294 + $0x8] sm:$0xff] %vm455, %v516
        %s519 = sand.u32 %s142, 1
        %s520 = scalar_lea.sflag [#allocation4], %s519
        %s521 = sand.u32 %s142, 1
        %s522 = smul.addr %s521, 16
        %s523 = scalar_lea.vmem [#allocation10], %s522
        // Predicated region
        $region57: #{tpu_custom_call.1} parent=39 // pred_check
          %p524 = pneg %p152
        $region58: #{tpu_custom_call.1} parent=39 // pred_check_branch
          %526 = sbr.rel (%p524) target = $region60
        $region59: #{tpu_custom_call.1} parent=39 // pred_region
          %528 = vsyncadd %s520, 0
          %s529 = smul.addr %s24, 2
          %s530 = smul.addr %s529, 8
          %s531 = scalar_lea.hbm %s5, %s530
          %s532 = sshll.u32 %s523, 4
          %s533 = int_to_ptr.vmem [resolvable:$true] %s532
          %s534 = sshll.u32 %s531, 4
          %s535 = int_to_ptr.hbm [resolvable:$true] %s534
          %540 = dma.vmem_to_hbm [thread:$0]  %s533, 256, %s535, %s520, 128, 128, 8
        $region60: #{tpu_custom_call.1} parent=39 // pred_fallthru
          _
      $region40: #{tpu_custom_call.1} parent=5 // pred_fallthru
        _
      %p541 = scmp.le.s32.totalorder 2, %s19
      // Predicated region
      $region61: #{tpu_custom_call.1} parent=5 // pred_check
        %p542 = pneg %p541
      $region62: #{tpu_custom_call.1} parent=5 // pred_check_branch
        %544 = sbr.rel (%p542) target = $region64
      $region63: #{tpu_custom_call.1} parent=5 // pred_region
        %s545 = ssub.s32 %s19, 2
        // Predicated region
        $region65: #{tpu_custom_call.1} parent=63 // pred_check
          %p546 = pneg %p158
        $region66: #{tpu_custom_call.1} parent=63 // pred_check_branch
          %548 = sbr.rel (%p546) target = $region68
        $region67: #{tpu_custom_call.1} parent=63 // pred_region
          %s549 = sand.u32 %s143, 1
          %s550 = scalar_lea.sflag [#allocation4], %s549
          %s551 = sand.u32 %s143, 1
          %s552 = smul.addr %s551, 16
          %s553 = scalar_lea.vmem [#allocation10], %s552
          %555 = dma.done %s550, 256
        $region68: #{tpu_custom_call.1} parent=63 // pred_fallthru
          _
      $region64: #{tpu_custom_call.1} parent=5 // pred_fallthru
        _
    $region6: #{tpu_custom_call.1} parent=1 // loop_footer
      %s23 = sadd.s32 1, %s19
    $region7: #{tpu_custom_call.1} parent=1 // loop_footer_branch
      %18 = sbr.rel target = $region3
    $region8: #{tpu_custom_call.1} parent=1 // loop_exit
      _
    %556 = vsyncpa [#allocation3], 1
    %s557 = scalar_lea.sflag [#allocation3], 1
    %558 = vsyncpa %s557, 1
    %559 = vsyncpa [#allocation6], 1
    %560 = vsyncpa [#allocation9], 1
    %561 = vsyncpa [#allocation4], 1
    %s562 = scalar_lea.sflag [#allocation4], 1
    %563 = vsyncpa %s562, 1

</llo_original>
